<compile_context>
chip_gen: v7x
topology: tpu7x:2x2x1
jax: 0.10.0
libtpu: 0.0.40
codegen_flags: <defaults>
</compile_context>

<pallas_src>
import numpy as np
import jax
import jax.numpy as jnp
from jax.experimental import pallas as pl
from jax.experimental.pallas import tpu as pltpu  # noqa: F401  (kept for TPU-specific knobs)

# ---- module constants (from the PyTorch file) -------------------------------
DIM = 7
LW_TIME = 10.0
UP_TIME = 60.0
LW_DIST = 1.0
UP_DIST = 10.0
WW = 7.0

_INV_T = 1.0 / (UP_TIME - LW_TIME)   # 1/50
_INV_D = 1.0 / (UP_DIST - LW_DIST)   # 1/9


# ---- fused Pallas kernel: euclidean_dist + get_location_vector ---------------
def _strnn_window_kernel(td_ref, dlat_ref, dlon_ref,
                         tu_ref, tl_ref, du_ref, dl_ref,
                         loc_ref, ld_ref):
    # window scalars, vectorized over the (1, w) row
    td = td_ref[...]
    dlat = dlat_ref[...]
    dlon = dlon_ref[...]

    # euclidean_dist fused in
    ld = jnp.sqrt(dlat * dlat + dlon * dlon)
    ld_ref[...] = ld

    # three scalar reductions over the window
    w = jnp.float32(td_ref.shape[1])          # static window length
    s_td = jnp.sum(td)
    s_ld = jnp.sum(ld)
    s_tdld = jnp.sum(td * ld)

    tu = tu_ref[...]
    tl = tl_ref[...]
    du = du_ref[...]
    dl = dl_ref[...]

    # bilinear decomposition of the interpolated matrices
    Ct = (tu * UP_TIME - tl * LW_TIME) * _INV_T
    Dt = (tl - tu) * _INV_T
    Ad = (du * UP_DIST - dl * LW_DIST) * _INV_D
    Bd = (dl - du) * _INV_D

    M1 = w * Ct + s_td * Dt
    M2 = s_ld * Ct + s_tdld * Dt

    # exactly two small matmuls, independent of window length
    loc_ref[...] = (jnp.dot(Ad, M1, preferred_element_type=jnp.float32)
                    + jnp.dot(Bd, M2, preferred_element_type=jnp.float32))


def strnn_window_compute(td, dlat, dlon,
                         time_upper, time_lower, dist_upper, dist_lower):
    """Fused ld = sqrt(dlat^2+dlon^2) and loc_vec = sum_i Sl_i @ Tt_i."""
    w = int(td.shape[0])
    assert w >= 1, "window must contain at least one checkin"
    d = int(time_upper.shape[0])

    td2 = jnp.asarray(td, jnp.float32).reshape(1, w)
    dlat2 = jnp.asarray(dlat, jnp.float32).reshape(1, w)
    dlon2 = jnp.asarray(dlon, jnp.float32).reshape(1, w)

    loc_vec, ld = pl.pallas_call(
        _strnn_window_kernel,
        out_shape=(jax.ShapeDtypeStruct((d, d), jnp.float32),
                   jax.ShapeDtypeStruct((1, w), jnp.float32)),
    )(td2, dlat2, dlon2,
      time_upper.astype(jnp.float32), time_lower.astype(jnp.float32),
      dist_upper.astype(jnp.float32), dist_lower.astype(jnp.float32))
    return loc_vec, ld.reshape(w)


# ---- host-side glue (control flow of the PyTorch module) ---------------------
def find_w_cap(times_np, i):
    """Faithful port of STRNNModule.find_w_cap on host scalars (numpy)."""
    trg_t = times_np[i] + WW
    tmp_t = times_np[i]
    tmp_i = i - 1
    for idx, t_w in enumerate(reversed(times_np[:i]), start=1):
        if t_w == trg_t:
            return i - idx
        elif t_w > trg_t:
            tmp_t = t_w
            tmp_i = i - idx
        elif t_w < trg_t:
            if trg_t - t_w < tmp_t - trg_t:
                return i - idx
            else:
                return tmp_i
    return 0


def init_params(key, user_cnt, n_poi):
    ks = jax.random.split(key, 9)
    return {
        "user_weight": jax.random.normal(ks[0], (user_cnt, DIM), jnp.float32),
        "h_0": jax.random.normal(ks[1], (DIM, 1), jnp.float32),
        "location_weight": jax.random.normal(ks[2], (n_poi, DIM), jnp.float32),
        "perm_weight": jax.random.normal(ks[3], (user_cnt, DIM), jnp.float32),
        "time_upper": jax.random.normal(ks[4], (DIM, DIM), jnp.float32),
        "time_lower": jax.random.normal(ks[5], (DIM, DIM), jnp.float32),
        "dist_upper": jax.random.normal(ks[6], (DIM, DIM), jnp.float32),
        "dist_lower": jax.random.normal(ks[7], (DIM, DIM), jnp.float32),
        "C": jax.random.normal(ks[8], (DIM, DIM), jnp.float32),
    }


def strnn_forward(params, user, times_np, latis_np, longis_np, locs, step=1):
    """Port of STRNNModule.forward / return_h_tw (minus file writes).

    times_np / latis_np / longis_np are HOST numpy arrays so that the
    data-dependent find_w_cap and the window slicing never trigger a
    device->host sync on the forward path.
    """
    idx = int(times_np.shape[0]) - 1
    w_cap = find_w_cap(times_np, idx)
    if w_cap == 0:
        return {"pos_h": params["h_0"]}

    # window deltas (same slicing as return_h_tw), computed on host scalars
    dlat = latis_np[idx] - latis_np[w_cap:idx]
    dlon = longis_np[idx] - longis_np[w_cap:idx]
    td = times_np[idx] - times_np[w_cap:idx]

    loc_vec, ld = strnn_window_compute(
        td, dlat, dlon,
        params["time_upper"], params["time_lower"],
        params["dist_upper"], params["dist_lower"])
    return {"td": jnp.asarray(td, jnp.float32), "ld": ld,
            "loc_vec": loc_vec, "h_0": params["h_0"]}


if __name__ == "__main__":
    key = jax.random.PRNGKey(0)
    user_cnt, n_poi = 5, 20
    params = init_params(key, user_cnt, n_poi)

    # Small deterministic example trajectory (seq=6).  These times make
    # find_w_cap return 1, giving a 4-step window for the kernel.
    times_np = np.array([3.0, 30.0, 29.0, 28.0, 27.0, 10.0], dtype=np.float32)
    k1, k2 = jax.random.split(jax.random.PRNGKey(1))
    latis_np = np.asarray(jax.random.uniform(k1, (6,), jnp.float32, 0.0, 5.0))
    longis_np = np.asarray(jax.random.uniform(k2, (6,), jnp.float32, 0.0, 5.0))
    locs = jnp.array([1, 4, 7, 2, 9, 3], dtype=jnp.int32)
    user = jnp.array([2], dtype=jnp.int32)

    out = strnn_forward(params, user, times_np, latis_np, longis_np, locs, step=1)
    for leaf in jax.tree_util.tree_leaves(out):
        jax.block_until_ready(leaf)

    # lightweight correctness check against plain JAX reference (original form)
    idx, w_cap = 5, 1
    td = jnp.asarray(times_np[idx] - times_np[w_cap:idx], jnp.float32)
    ld_ref = jnp.sqrt(jnp.asarray(latis_np[idx] - latis_np[w_cap:idx]) ** 2
                      + jnp.asarray(longis_np[idx] - longis_np[w_cap:idx]) ** 2)
    tud, tdd = UP_TIME - td, td - LW_TIME
    lud, ldd = UP_DIST - ld_ref, ld_ref - LW_DIST
    ref = jnp.zeros((DIM, DIM), jnp.float32)
    for i in range(td.shape[0]):
        Tt = (params["time_upper"] * tud[i] + params["time_lower"] * tdd[i]) / (tud[i] + tdd[i])
        Sl = (params["dist_upper"] * lud[i] + params["dist_lower"] * ldd[i]) / (lud[i] + ldd[i])
        ref = ref + Sl @ Tt
    assert jnp.allclose(out["ld"], ld_ref, atol=1e-5), "ld mismatch"
    assert jnp.allclose(out["loc_vec"], ref, rtol=1e-4, atol=1e-3), "loc_vec mismatch"

    print("KERNEL_OK")
</pallas_src>

<mosaic_0001>
module attributes {stable_mosaic.version = 11 : i64} {
  func.func @_strnn_window_kernel(%arg0: memref<1x4xf32, #tpu.memory_space<vmem>>, %arg1: memref<1x4xf32, #tpu.memory_space<vmem>>, %arg2: memref<1x4xf32, #tpu.memory_space<vmem>>, %arg3: memref<7x7xf32, #tpu.memory_space<vmem>>, %arg4: memref<7x7xf32, #tpu.memory_space<vmem>>, %arg5: memref<7x7xf32, #tpu.memory_space<vmem>>, %arg6: memref<7x7xf32, #tpu.memory_space<vmem>>, %arg7: memref<7x7xf32, #tpu.memory_space<vmem>>, %arg8: memref<1x4xf32, #tpu.memory_space<vmem>>) attributes {dimension_semantics = [], scalar_prefetch = 0 : i64, scratch_operands = 0 : i64, tpu.core_type = #tpu.core_type<tc>} {
    %c0 = arith.constant 0 : index
    %c0_0 = arith.constant 0 : index
    %0 = vector.load %arg0[%c0, %c0_0] : memref<1x4xf32, #tpu.memory_space<vmem>>, vector<1x4xf32>
    %c0_1 = arith.constant 0 : index
    %c0_2 = arith.constant 0 : index
    %1 = vector.load %arg1[%c0_1, %c0_2] : memref<1x4xf32, #tpu.memory_space<vmem>>, vector<1x4xf32>
    %c0_3 = arith.constant 0 : index
    %c0_4 = arith.constant 0 : index
    %2 = vector.load %arg2[%c0_3, %c0_4] : memref<1x4xf32, #tpu.memory_space<vmem>>, vector<1x4xf32>
    %3 = arith.mulf %1, %1 : vector<1x4xf32>
    %4 = arith.mulf %2, %2 : vector<1x4xf32>
    %5 = arith.addf %3, %4 : vector<1x4xf32>
    %6 = math.sqrt %5 : vector<1x4xf32>
    %c0_5 = arith.constant 0 : index
    %c0_6 = arith.constant 0 : index
    %7 = vector.load %arg8[%c0_5, %c0_6] : memref<1x4xf32, #tpu.memory_space<vmem>>, vector<1x4xf32>
    tpu.vector_store %arg8[%c0_5, %c0_6], %6 {strides = array<i32>} : memref<1x4xf32, #tpu.memory_space<vmem>>, vector<1x4xf32>,
    %8 = vector.shape_cast %0 : vector<1x4xf32> to vector<1x1x4xf32>
    %cst = arith.constant dense<0.000000e+00> : vector<1xf32>
    %9 = vector.multi_reduction <add>, %8, %cst [1, 2] : vector<1x1x4xf32> to vector<1xf32>
    %10 = vector.shape_cast %9 : vector<1xf32> to vector<1x1x1xf32>
    %11 = vector.extract %10[0, 0, 0] : f32 from vector<1x1x1xf32>
    %12 = vector.shape_cast %6 : vector<1x4xf32> to vector<1x1x4xf32>
    %cst_7 = arith.constant dense<0.000000e+00> : vector<1xf32>
    %13 = vector.multi_reduction <add>, %12, %cst_7 [1, 2] : vector<1x1x4xf32> to vector<1xf32>
    %14 = vector.shape_cast %13 : vector<1xf32> to vector<1x1x1xf32>
    %15 = vector.extract %14[0, 0, 0] : f32 from vector<1x1x1xf32>
    %16 = arith.mulf %0, %6 : vector<1x4xf32>
    %17 = vector.shape_cast %16 : vector<1x4xf32> to vector<1x1x4xf32>
    %cst_8 = arith.constant dense<0.000000e+00> : vector<1xf32>
    %18 = vector.multi_reduction <add>, %17, %cst_8 [1, 2] : vector<1x1x4xf32> to vector<1xf32>
    %19 = vector.shape_cast %18 : vector<1xf32> to vector<1x1x1xf32>
    %20 = vector.extract %19[0, 0, 0] : f32 from vector<1x1x1xf32>
    %c0_9 = arith.constant 0 : index
    %c0_10 = arith.constant 0 : index
    %21 = vector.load %arg3[%c0_9, %c0_10] : memref<7x7xf32, #tpu.memory_space<vmem>>, vector<7x7xf32>
    %c0_11 = arith.constant 0 : index
    %c0_12 = arith.constant 0 : index
    %22 = vector.load %arg4[%c0_11, %c0_12] : memref<7x7xf32, #tpu.memory_space<vmem>>, vector<7x7xf32>
    %c0_13 = arith.constant 0 : index
    %c0_14 = arith.constant 0 : index
    %23 = vector.load %arg5[%c0_13, %c0_14] : memref<7x7xf32, #tpu.memory_space<vmem>>, vector<7x7xf32>
    %c0_15 = arith.constant 0 : index
    %c0_16 = arith.constant 0 : index
    %24 = vector.load %arg6[%c0_15, %c0_16] : memref<7x7xf32, #tpu.memory_space<vmem>>, vector<7x7xf32>
    %cst_17 = arith.constant 6.000000e+01 : f32
    %25 = vector.broadcast %cst_17 : f32 to vector<7x7xf32>
    %26 = arith.mulf %21, %25 : vector<7x7xf32>
    %cst_18 = arith.constant 1.000000e+01 : f32
    %27 = vector.broadcast %cst_18 : f32 to vector<7x7xf32>
    %28 = arith.mulf %22, %27 : vector<7x7xf32>
    %29 = arith.subf %26, %28 : vector<7x7xf32>
    %cst_19 = arith.constant 2.000000e-02 : f32
    %30 = vector.broadcast %cst_19 : f32 to vector<7x7xf32>
    %31 = arith.mulf %29, %30 : vector<7x7xf32>
    %32 = arith.subf %22, %21 : vector<7x7xf32>
    %cst_20 = arith.constant 2.000000e-02 : f32
    %33 = vector.broadcast %cst_20 : f32 to vector<7x7xf32>
    %34 = arith.mulf %32, %33 : vector<7x7xf32>
    %cst_21 = arith.constant 1.000000e+01 : f32
    %35 = vector.broadcast %cst_21 : f32 to vector<7x7xf32>
    %36 = arith.mulf %23, %35 : vector<7x7xf32>
    %cst_22 = arith.constant 1.000000e+00 : f32
    %37 = vector.broadcast %cst_22 : f32 to vector<7x7xf32>
    %38 = arith.mulf %24, %37 : vector<7x7xf32>
    %39 = arith.subf %36, %38 : vector<7x7xf32>
    %cst_23 = arith.constant 0.111111112 : f32
    %40 = vector.broadcast %cst_23 : f32 to vector<7x7xf32>
    %41 = arith.mulf %39, %40 : vector<7x7xf32>
    %42 = arith.subf %24, %23 : vector<7x7xf32>
    %cst_24 = arith.constant 0.111111112 : f32
    %43 = vector.broadcast %cst_24 : f32 to vector<7x7xf32>
    %44 = arith.mulf %42, %43 : vector<7x7xf32>
    %cst_25 = arith.constant 4.000000e+00 : f32
    %45 = vector.broadcast %cst_25 : f32 to vector<7x7xf32>
    %46 = arith.mulf %45, %31 : vector<7x7xf32>
    %47 = vector.broadcast %11 : f32 to vector<7x7xf32>
    %48 = arith.mulf %47, %34 : vector<7x7xf32>
    %49 = arith.addf %46, %48 : vector<7x7xf32>
    %50 = vector.broadcast %15 : f32 to vector<7x7xf32>
    %51 = arith.mulf %50, %31 : vector<7x7xf32>
    %52 = vector.broadcast %20 : f32 to vector<7x7xf32>
    %53 = arith.mulf %52, %34 : vector<7x7xf32>
    %54 = arith.addf %51, %53 : vector<7x7xf32>
    %cst_26 = arith.constant dense<0.000000e+00> : vector<7x7xf32>
    %55 = tpu.matmul %41, %49, %cst_26 {dimension_numbers = #tpu.dot_dimension_numbers<[1], [0], [0], [1], [0, 0, 1, 1], [], []>} : vector<7x7xf32>, vector<7x7xf32>, vector<7x7xf32> -> vector<7x7xf32>
    %cst_27 = arith.constant dense<0.000000e+00> : vector<7x7xf32>
    %56 = tpu.matmul %44, %54, %cst_27 {dimension_numbers = #tpu.dot_dimension_numbers<[1], [0], [0], [1], [0, 0, 1, 1], [], []>} : vector<7x7xf32>, vector<7x7xf32>, vector<7x7xf32> -> vector<7x7xf32>
    %57 = arith.addf %55, %56 : vector<7x7xf32>
    %c0_28 = arith.constant 0 : index
    %c0_29 = arith.constant 0 : index
    %58 = vector.load %arg7[%c0_28, %c0_29] : memref<7x7xf32, #tpu.memory_space<vmem>>, vector<7x7xf32>
    tpu.vector_store %arg7[%c0_28, %c0_29], %57 {strides = array<i32>} : memref<7x7xf32, #tpu.memory_space<vmem>>, vector<7x7xf32>,
    return
  }
}

</mosaic_0001>

<llo_original>
// kernel: tpu_custom_call.1
$region0: #{tpu_custom_call.1}
  #allocation0 [shape = 'u32[]', space=smem, size = 0x4, offset = 0x4, fixed_abs, tag = 'smem constant byte address 0x4 - core index']
  #allocation1 [shape = 'u32[144,128]{1,0:T(1,128)}', space=vmem, size = 0x12000, scoped, tag = 'internal scratch']
  %s0 = inlined_call_operand.hbm [shape: f32[1,4], index: 0, kind: input, shape index: {}]
  %s1 = inlined_call_operand.vmem [shape: f32[1,4], index: 1, kind: input, shape index: {}]
  %s2 = inlined_call_operand.vmem [shape: f32[1,4], index: 2, kind: input, shape index: {}]
  %s3 = inlined_call_operand.vmem [shape: f32[7,7], index: 3, kind: input, shape index: {}]
  %s4 = inlined_call_operand.hbm [shape: f32[7,7], index: 4, kind: input, shape index: {}]
  %s5 = inlined_call_operand.vmem [shape: f32[7,7], index: 5, kind: input, shape index: {}]
  %s6 = inlined_call_operand.hbm [shape: f32[7,7], index: 6, kind: input, shape index: {}]
  %s7 = inlined_call_operand.hbm [shape: f32[7,7], index: 7, kind: output, shape index: {0}]
  %s8 = inlined_call_operand.hbm [shape: f32[1,4], index: 8, kind: output, shape index: {1}]
  %9 = xla_tuple %s7, %s8
  %s10 = sld [smem:[#allocation0]]
  $region58: #{tpu_custom_call.1} parent=0
    _
  %s12 = ssub.s32 1, %s10
  %s13 = scalar_select 0, %s12, %s10
  $region1: #{tpu_custom_call.1} parent=0
    #allocation2 [shape = 'u8[512]{0}', space=vmem, size = 0x400, scoped, tag = 'input window, operand 0, single buffered']
    #allocation3 [shape = 's32[1]{0}', space=sflag, size = 0x4, scoped, tag = 'scoped memory for tpu_custom_call.1']
    #allocation4 [shape = 's32[1]{0}', space=sflag, size = 0x4, scoped, tag = 'scoped memory for tpu_custom_call.1']
    #allocation5 [shape = 'u8[4096]{0}', space=vmem, size = 0x1000, scoped, tag = 'input window, operand 4, single buffered']
    #allocation6 [shape = 's32[1]{0}', space=sflag, size = 0x4, scoped, tag = 'scoped memory for tpu_custom_call.1']
    #allocation7 [shape = 'u8[4096]{0}', space=vmem, size = 0x1000, scoped, tag = 'input window, operand 6, single buffered']
    #allocation8 [shape = 'u8[4096]{0}', space=vmem, size = 0x1000, scoped, tag = 'output window, operand 0, single buffered']
    #allocation9 [shape = 'u8[512]{0}', space=vmem, size = 0x400, scoped, tag = 'output window, operand 1, single buffered']
    #allocation10 [shape = 's32[1]{0}', space=sflag, size = 0x4, scoped, tag = 'scoped memory for tpu_custom_call.1']
    %14 = vsyncpa [#allocation3], 0
    %15 = vsyncpa [#allocation6], 0
    %16 = vsyncpa [#allocation4], 0
    %17 = vsyncpa [#allocation10], 0
    // Predicated region
    $region2: #{tpu_custom_call.1} parent=1 // pred_check
      _
    $region3: #{tpu_custom_call.1} parent=1 // pred_check_branch
      %19 = sbr.rel (0) target = $region5
    $region4: #{tpu_custom_call.1} parent=1 // pred_region
      %s21 = ssub.s32 16, 16
      %22 = vsyncadd [#allocation3], %s21
      %s24 = sshll.u32 [#allocation2], 4
      %s25 = int_to_ptr.vmem [resolvable:$true] %s24
      %27 = dma.hbm_to_vmem [thread:$0]  %s0, 16, %s25, [#allocation3]
    $region5: #{tpu_custom_call.1} parent=1 // pred_fallthru
      _
    // Predicated region
    $region6: #{tpu_custom_call.1} parent=1 // pred_check
      _
    $region7: #{tpu_custom_call.1} parent=1 // pred_check_branch
      %29 = sbr.rel (0) target = $region9
    $region8: #{tpu_custom_call.1} parent=1 // pred_region
      _
    $region9: #{tpu_custom_call.1} parent=1 // pred_fallthru
      _
    // Predicated region
    $region10: #{tpu_custom_call.1} parent=1 // pred_check
      _
    $region11: #{tpu_custom_call.1} parent=1 // pred_check_branch
      %31 = sbr.rel (0) target = $region13
    $region12: #{tpu_custom_call.1} parent=1 // pred_region
      _
    $region13: #{tpu_custom_call.1} parent=1 // pred_fallthru
      _
    // Predicated region
    $region14: #{tpu_custom_call.1} parent=1 // pred_check
      _
    $region15: #{tpu_custom_call.1} parent=1 // pred_check_branch
      %33 = sbr.rel (0) target = $region17
    $region16: #{tpu_custom_call.1} parent=1 // pred_region
      _
    $region17: #{tpu_custom_call.1} parent=1 // pred_fallthru
      _
    // Predicated region
    $region18: #{tpu_custom_call.1} parent=1 // pred_check
      _
    $region19: #{tpu_custom_call.1} parent=1 // pred_check_branch
      %35 = sbr.rel (0) target = $region21
    $region20: #{tpu_custom_call.1} parent=1 // pred_region
      %s37 = ssub.s32 128, 128
      %38 = vsyncadd [#allocation6], %s37
      %s40 = sshll.u32 [#allocation5], 4
      %s41 = int_to_ptr.vmem [resolvable:$true] %s40
      %43 = dma.hbm_to_vmem [thread:$0]  %s4, 128, %s41, [#allocation6]
    $region21: #{tpu_custom_call.1} parent=1 // pred_fallthru
      _
    // Predicated region
    $region22: #{tpu_custom_call.1} parent=1 // pred_check
      _
    $region23: #{tpu_custom_call.1} parent=1 // pred_check_branch
      %45 = sbr.rel (0) target = $region25
    $region24: #{tpu_custom_call.1} parent=1 // pred_region
      _
    $region25: #{tpu_custom_call.1} parent=1 // pred_fallthru
      _
    // Predicated region
    $region26: #{tpu_custom_call.1} parent=1 // pred_check
      _
    $region27: #{tpu_custom_call.1} parent=1 // pred_check_branch
      %47 = sbr.rel (0) target = $region29
    $region28: #{tpu_custom_call.1} parent=1 // pred_region
      %s49 = ssub.s32 128, 128
      %50 = vsyncadd [#allocation6], %s49
      %s52 = sshll.u32 [#allocation7], 4
      %s53 = int_to_ptr.vmem [resolvable:$true] %s52
      %55 = dma.hbm_to_vmem [thread:$0]  %s6, 128, %s53, [#allocation6]
    $region29: #{tpu_custom_call.1} parent=1 // pred_fallthru
      _
    // Predicated region
    $region30: #{tpu_custom_call.1} parent=1 // pred_check
      _
    $region31: #{tpu_custom_call.1} parent=1 // pred_check_branch
      %57 = sbr.rel (0) target = $region33
    $region32: #{tpu_custom_call.1} parent=1 // pred_region
      %58 = dma.done [#allocation3], 16
    $region33: #{tpu_custom_call.1} parent=1 // pred_fallthru
      _
    // Predicated region
    $region34: #{tpu_custom_call.1} parent=1 // pred_check
      _
    $region35: #{tpu_custom_call.1} parent=1 // pred_check_branch
      %60 = sbr.rel (0) target = $region37
    $region36: #{tpu_custom_call.1} parent=1 // pred_region
      %61 = dma.done [#allocation6], 128
    $region37: #{tpu_custom_call.1} parent=1 // pred_fallthru
      _
    // Predicated region
    $region38: #{tpu_custom_call.1} parent=1 // pred_check
      _
    $region39: #{tpu_custom_call.1} parent=1 // pred_check_branch
      %63 = sbr.rel (0) target = $region41
    $region40: #{tpu_custom_call.1} parent=1 // pred_region
      %64 = dma.done [#allocation6], 128
    $region41: #{tpu_custom_call.1} parent=1 // pred_fallthru
      _
    %v65 = vld [vmem:[#allocation2] sm:$0x1]
    %v66 = vld [vmem:[%s1] sm:$0x1]
    %v67 = vld [vmem:[%s2] sm:$0x1]
    %v68 = vmul.f32 %v66, %v66
    %v69 = vmul.f32 %v67, %v67
    %v70 = vadd.f32 %v68, %v69
    %v71 = vrsqrt.pop %v70
    %v72 = vmul.f32 %v70, %v71
    %vm73 = vcmp.eq.f32.partialorder %v70, inf
    %v74 = vsel %vm73, %v70, %v72
    %vm75 = vcmp.eq.f32.partialorder %v70, 0.0
    %v76 = vand.u32 %v70, 2147483648
    %v77 = vsel %vm75, %v76, %v74
    %vm78 = vcmask 24576
    %79 = vst.msk [vmem:[#allocation9] sm:$0x1] %vm78, %v77
    %v80 = vsel %vm78, %v65, 0.0
    %81 = vadd.xlane.f32.xlu0 %v80
    %v82 = vpop.xlane.xlu0 %81
    %v83 = vrot.slane %v82, 4
    %v84 = vadd.f32 %v82, %v83
    %v85 = vrot.slane %v84, 2
    %v86 = vadd.f32 %v84, %v85
    %v87 = vrot.slane %v86, 1
    %v88 = vadd.f32 %v86, %v87
    %s89 = vtos %v88
    %v90 = vsel %vm78, %v77, 0.0
    %91 = vadd.xlane.f32.xlu0 %v90
    %v92 = vpop.xlane.xlu0 %91
    %v93 = vrot.slane %v92, 4
    %v94 = vadd.f32 %v92, %v93
    %v95 = vrot.slane %v94, 2
    %v96 = vadd.f32 %v94, %v95
    %v97 = vrot.slane %v96, 1
    %v98 = vadd.f32 %v96, %v97
    %s99 = vtos %v98
    %v100 = vmul.f32 %v65, %v77
    %v101 = vsel %vm78, %v100, 0.0
    %102 = vadd.xlane.f32.xlu0 %v101
    %v103 = vpop.xlane.xlu0 %102
    %v104 = vrot.slane %v103, 4
    %v105 = vadd.f32 %v103, %v104
    %v106 = vrot.slane %v105, 2
    %v107 = vadd.f32 %v105, %v106
    %v108 = vrot.slane %v107, 1
    %v109 = vadd.f32 %v107, %v108
    %s110 = vtos %v109
    %v111 = vld [vmem:[%s3] sm:$0x7f]
    %v112 = vld [vmem:[#allocation5] sm:$0x7f]
    %v113 = vld [vmem:[%s5] sm:$0x7f]
    %v114 = vld [vmem:[#allocation7] sm:$0x7f]
    %v115 = vmul.f32 %v111, 60.0
    %v116 = vmul.f32 %v112, 10.0
    %v117 = vsub.f32 %v115, %v116
    %v118 = vmul.f32 %v117, 0.02
    %v119 = vsub.f32 %v112, %v111
    %v120 = vmul.f32 %v119, 0.02
    %v121 = vmul.f32 %v113, 10.0
    %v122 = vsub.f32 %v121, %v114
    %v123 = vmul.f32 %v122, 0.11111111
    %v124 = vsub.f32 %v114, %v113
    %v125 = vmul.f32 %v124, 0.11111111
    %v126 = vmul.f32 %v118, 4.0
    %v127 = vstv %s89
    %v128 = vmul.f32 %v127, %v120
    %v129 = vadd.f32 %v126, %v128
    %v130 = vstv %s99
    %v131 = vmul.f32 %v130, %v118
    %v132 = vstv %s110
    %v133 = vmul.f32 %v132, %v120
    %v134 = vadd.f32 %v131, %v133
    %vm135 = vcmask 56320
    %v137 = vsel %vm135, %v125, 0
    %vm139 = vcmask 1046528
    %v141 = vsel %vm139, %v134, 0
    %143 = vmatprep.subr.mxu0 0.0
    %144 = vmatpush1.msra.mxu0 %v141
    %145 = vmatprep.subr.mxu0 0.0
    %146 = vmatpush1.msra.mxu0 0.0
    %147 = vmatprep.subr.mxu0 0.0
    %148 = vmatpush1.msra.mxu0 0.0
    %149 = vmatprep.subr.mxu0 0.0
    %150 = vmatpush1.msra.mxu0 0.0
    %151 = vmatprep.subr.mxu0 0.0
    %152 = vmatpush1.msra.mxu0 0.0
    %153 = vmatprep.subr.mxu0 0.0
    %154 = vmatpush1.msra.mxu0 0.0
    %155 = vmatprep.subr.mxu0 0.0
    %156 = vmatpush1.msra.mxu0 0.0
    %157 = vmatprep.subr.mxu0 0.0
    %158 = vmatpush1.msra.mxu0 0.0
    %159 = vmatprep.subr.mxu0 0.0
    %160 = vmatpush1.msra.mxu0 0.0
    %161 = vmatprep.subr.mxu0 0.0
    %162 = vmatpush1.msra.mxu0 0.0
    %163 = vmatprep.subr.mxu0 0.0
    %164 = vmatpush1.msra.mxu0 0.0
    %165 = vmatprep.subr.mxu0 0.0
    %166 = vmatpush1.msra.mxu0 0.0
    %167 = vmatprep.subr.mxu0 0.0
    %168 = vmatpush1.msra.mxu0 0.0
    %169 = vmatprep.subr.mxu0 0.0
    %170 = vmatpush1.msra.mxu0 0.0
    %171 = vmatprep.subr.mxu0 0.0
    %172 = vmatpush1.msra.mxu0 0.0
    %173 = vmatprep.subr.mxu0 0.0
    %174 = vmatpush1.msra.mxu0 0.0
    %175 = vmatprep.subr.mxu0 0.0
    %176 = vmatpush1.msra.mxu0 0.0
    %177 = vmatprep.subr.mxu0 0.0
    %178 = vmatpush1.msra.mxu0 0.0
    %179 = vmatprep.subr.mxu0 0.0
    %180 = vmatpush1.msra.mxu0 0.0
    %181 = vmatprep.subr.mxu0 0.0
    %182 = vmatpush1.msra.mxu0 0.0
    %183 = vmatprep.subr.mxu0 0.0
    %184 = vmatpush1.msra.mxu0 0.0
    %185 = vmatprep.subr.mxu0 0.0
    %186 = vmatpush1.msra.mxu0 0.0
    %187 = vmatprep.subr.mxu0 0.0
    %188 = vmatpush1.msra.mxu0 0.0
    %189 = vmatprep.subr.mxu0 0.0
    %190 = vmatpush1.msra.mxu0 0.0
    %191 = vmatprep.subr.mxu0 0.0
    %192 = vmatpush1.msra.mxu0 0.0
    %193 = vmatprep.subr.mxu0 0.0
    %194 = vmatpush1.msra.mxu0 0.0
    %195 = vmatprep.subr.mxu0 0.0
    %196 = vmatpush1.msra.mxu0 0.0
    %197 = vmatprep.subr.mxu0 0.0
    %198 = vmatpush1.msra.mxu0 0.0
    %199 = vmatprep.subr.mxu0 0.0
    %200 = vmatpush1.msra.mxu0 0.0
    %201 = vmatprep.subr.mxu0 0.0
    %202 = vmatpush1.msra.mxu0 0.0
    %203 = vmatprep.subr.mxu0 0.0
    %204 = vmatpush1.msra.mxu0 0.0
    %205 = vmatprep.subr.mxu0 0.0
    %206 = vmatpush1.msra.mxu0 0.0
    %207 = vmatprep.mubr.f32.mxu0 0.0
    %208 = vmatmul.mubr.f32.gmra.mrb[0].mxu0 %v137
    %v209 = vpop.f32.mrb[0].mxu0
    %v210 = vadd.f32 0.0, %v209
    %v211 = vpop.f32.mrb[0].mxu0
    %212 = vdwg.mxu0
    %v214 = vsel %vm135, %v123, 0
    %v217 = vsel %vm139, %v129, 0
    %219 = vmatprep.subr.mxu0 0.0
    %220 = vmatpush1.msra.mxu0 %v217
    %221 = vmatprep.subr.mxu0 0.0
    %222 = vmatpush1.msra.mxu0 0.0
    %223 = vmatprep.subr.mxu0 0.0
    %224 = vmatpush1.msra.mxu0 0.0
    %225 = vmatprep.subr.mxu0 0.0
    %226 = vmatpush1.msra.mxu0 0.0
    %227 = vmatprep.subr.mxu0 0.0
    %228 = vmatpush1.msra.mxu0 0.0
    %229 = vmatprep.subr.mxu0 0.0
    %230 = vmatpush1.msra.mxu0 0.0
    %231 = vmatprep.subr.mxu0 0.0
    %232 = vmatpush1.msra.mxu0 0.0
    %233 = vmatprep.subr.mxu0 0.0
    %234 = vmatpush1.msra.mxu0 0.0
    %235 = vmatprep.subr.mxu0 0.0
    %236 = vmatpush1.msra.mxu0 0.0
    %237 = vmatprep.subr.mxu0 0.0
    %238 = vmatpush1.msra.mxu0 0.0
    %239 = vmatprep.subr.mxu0 0.0
    %240 = vmatpush1.msra.mxu0 0.0
    %241 = vmatprep.subr.mxu0 0.0
    %242 = vmatpush1.msra.mxu0 0.0
    %243 = vmatprep.subr.mxu0 0.0
    %244 = vmatpush1.msra.mxu0 0.0
    %245 = vmatprep.subr.mxu0 0.0
    %246 = vmatpush1.msra.mxu0 0.0
    %247 = vmatprep.subr.mxu0 0.0
    %248 = vmatpush1.msra.mxu0 0.0
    %249 = vmatprep.subr.mxu0 0.0
    %250 = vmatpush1.msra.mxu0 0.0
    %251 = vmatprep.subr.mxu0 0.0
    %252 = vmatpush1.msra.mxu0 0.0
    %253 = vmatprep.subr.mxu0 0.0
    %254 = vmatpush1.msra.mxu0 0.0
    %255 = vmatprep.subr.mxu0 0.0
    %256 = vmatpush1.msra.mxu0 0.0
    %257 = vmatprep.subr.mxu0 0.0
    %258 = vmatpush1.msra.mxu0 0.0
    %259 = vmatprep.subr.mxu0 0.0
    %260 = vmatpush1.msra.mxu0 0.0
    %261 = vmatprep.subr.mxu0 0.0
    %262 = vmatpush1.msra.mxu0 0.0
    %263 = vmatprep.subr.mxu0 0.0
    %264 = vmatpush1.msra.mxu0 0.0
    %265 = vmatprep.subr.mxu0 0.0
    %266 = vmatpush1.msra.mxu0 0.0
    %267 = vmatprep.subr.mxu0 0.0
    %268 = vmatpush1.msra.mxu0 0.0
    %269 = vmatprep.subr.mxu0 0.0
    %270 = vmatpush1.msra.mxu0 0.0
    %271 = vmatprep.subr.mxu0 0.0
    %272 = vmatpush1.msra.mxu0 0.0
    %273 = vmatprep.subr.mxu0 0.0
    %274 = vmatpush1.msra.mxu0 0.0
    %275 = vmatprep.subr.mxu0 0.0
    %276 = vmatpush1.msra.mxu0 0.0
    %277 = vmatprep.subr.mxu0 0.0
    %278 = vmatpush1.msra.mxu0 0.0
    %279 = vmatprep.subr.mxu0 0.0
    %280 = vmatpush1.msra.mxu0 0.0
    %281 = vmatprep.subr.mxu0 0.0
    %282 = vmatpush1.msra.mxu0 0.0
    %283 = vmatprep.mubr.f32.mxu0 0.0
    %284 = vmatmul.mubr.f32.gmra.mrb[0].mxu0 %v214
    %v285 = vpop.f32.mrb[0].mxu0
    %v286 = vadd.f32 %v210, %v285
    %v287 = vpop.f32.mrb[0].mxu0
    %288 = vdwg.mxu0
    %vm289 = vcmask 55296
    %290 = vst.msk [vmem:[#allocation8] sm:$0x7f] %vm289, %v286
    // Predicated region
    $region42: #{tpu_custom_call.1} parent=1 // pred_check
      _
    $region43: #{tpu_custom_call.1} parent=1 // pred_check_branch
      %292 = sbr.rel (0) target = $region45
    $region44: #{tpu_custom_call.1} parent=1 // pred_region
      %s294 = ssub.s32 128, 128
      %295 = vsyncadd [#allocation4], %s294
      %s297 = sshll.u32 [#allocation8], 4
      %s298 = int_to_ptr.vmem [resolvable:$true] %s297
      %300 = dma.vmem_to_hbm [thread:$0]  %s298, 128, %s7, [#allocation4]
    $region45: #{tpu_custom_call.1} parent=1 // pred_fallthru
      _
    // Predicated region
    $region46: #{tpu_custom_call.1} parent=1 // pred_check
      _
    $region47: #{tpu_custom_call.1} parent=1 // pred_check_branch
      %302 = sbr.rel (0) target = $region49
    $region48: #{tpu_custom_call.1} parent=1 // pred_region
      %s304 = ssub.s32 16, 16
      %305 = vsyncadd [#allocation10], %s304
      %s307 = sshll.u32 [#allocation9], 4
      %s308 = int_to_ptr.vmem [resolvable:$true] %s307
      %310 = dma.vmem_to_hbm [thread:$0]  %s308, 16, %s8, [#allocation10]
    $region49: #{tpu_custom_call.1} parent=1 // pred_fallthru
      _
    // Predicated region
    $region50: #{tpu_custom_call.1} parent=1 // pred_check
      _
    $region51: #{tpu_custom_call.1} parent=1 // pred_check_branch
      %312 = sbr.rel (0) target = $region53
    $region52: #{tpu_custom_call.1} parent=1 // pred_region
      %313 = dma.done [#allocation4], 128
    $region53: #{tpu_custom_call.1} parent=1 // pred_fallthru
      _
    // Predicated region
    $region54: #{tpu_custom_call.1} parent=1 // pred_check
      _
    $region55: #{tpu_custom_call.1} parent=1 // pred_check_branch
      %315 = sbr.rel (0) target = $region57
    $region56: #{tpu_custom_call.1} parent=1 // pred_region
      %316 = dma.done [#allocation10], 16
    $region57: #{tpu_custom_call.1} parent=1 // pred_fallthru
      _
    %317 = vsyncpa [#allocation3], 1
    %318 = vsyncpa [#allocation6], 1
    %319 = vsyncpa [#allocation4], 1
    %320 = vsyncpa [#allocation10], 1

</llo_original>
